<compile_context>
chip_gen: v6e
topology: v6e:2x2x1
jax: 0.10.0
libtpu: 0.0.40
codegen_flags: <defaults>
</compile_context>

<pallas_src>
from functools import partial

import jax
import jax.numpy as jnp
from jax import lax
from jax.experimental import pallas as pl
from jax.experimental.pallas import tpu as pltpu

_BN_EPS = 1e-5
_ROLL_LANE_MIN = 128            # use pltpu.roll only when the flat spatial dim is >= this
_roll_matches_jnp_cache = None


# ----------------------------------------------------------------------------
# One-time probe of pltpu.roll's rotation direction (removes any convention risk)
# ----------------------------------------------------------------------------
def _roll_matches_jnp():
    """True if pltpu.roll follows the jnp.roll convention (out[i] = x[(i - shift) % N])."""
    global _roll_matches_jnp_cache
    if _roll_matches_jnp_cache is None:
        def probe(x_ref, o_ref):
            o_ref[...] = pltpu.roll(x_ref[...], 1, axis=1)

        x = jnp.tile(jnp.arange(128, dtype=jnp.float32)[None, :], (8, 1))
        out = pl.pallas_call(
            probe, out_shape=jax.ShapeDtypeStruct((8, 128), jnp.float32))(x)
        _roll_matches_jnp_cache = bool(out[0, 0] == 127.0)
    return _roll_matches_jnp_cache


# ----------------------------------------------------------------------------
# Static per-conv geometry plan
# ----------------------------------------------------------------------------
def _encoder_stage_plan(in_channels, init_channels, H, W):
    """List of 10 tuples (H, W, Cin, Cout); convs 2s and 2s+1 form encoder stage s."""
    c = init_channels
    stage_io = [(in_channels, c), (c, c), (c, 2 * c), (2 * c, 4 * c), (4 * c, 4 * c)]
    plan = []
    h, w = H, W
    for cin, cout in stage_io:
        plan.append((h, w, cin, cout))      # conv_block1
        plan.append((h, w, cout, cout))     # conv_block2
        h, w = h // 2, w // 2               # MaxPool2d(2) after the stage
    return plan


# ----------------------------------------------------------------------------
# Fused encoder kernel (whole forward pass for one batch element per grid step)
# ----------------------------------------------------------------------------
def _make_encoder_kernel(plan, roll_matches_jnp):
    """Kernel ref order: [x, (w,b,scale,shift) x10] ++ [f1..f5, pooled]."""
    n_conv = len(plan)          # 10
    n_stage = n_conv // 2       # 5

    def shift_cols(a, d, hw):
        """s[:, p] = a[:, p + d] wherever p + d is a valid flat position.

        Wrapped / out-of-range positions are exactly zero on the matmul path and
        wrapped garbage on the roll path -- callers mask them before use."""
        if d == 0:
            return a
        if hw >= _ROLL_LANE_MIN:
            amt = (-d) % hw if roll_matches_jnp else d % hw
            return pltpu.roll(a, amt, axis=1)                   # XLU lane rotation
        # Tiny late stages: lane shift via a small MXU selection matrix.
        q = lax.broadcasted_iota(jnp.int32, (hw, hw), 0)
        p = lax.broadcasted_iota(jnp.int32, (hw, hw), 1)
        sel = (q == p + d).astype(jnp.float32)
        return jnp.dot(a, sel, preferred_element_type=jnp.float32)

    def kernel(*refs):
        x_ref = refs[0]
        param_refs = [refs[1 + 4 * i: 1 + 4 * (i + 1)] for i in range(n_conv)]
        out_refs = refs[1 + 4 * n_conv: 1 + 4 * n_conv + n_stage + 1]

        def conv_block(a, ci):
            """Conv2d(3x3, pad=1)+bias -> ReLU -> BatchNorm2d(eval), spatial-last layout."""
            H, W, cin, cout = plan[ci]
            hw = H * W
            w_ref, b_ref, sc_ref, sh_ref = param_refs[ci]

            pcol = lax.broadcasted_iota(jnp.int32, (1, hw), 1)   # flat position p
            yy = pcol // W
            xx = pcol - yy * W

            taps = []
            for oy in (-1, 0, 1):
                for ox in (-1, 0, 1):
                    t = shift_cols(a, oy * W + ox, hw)
                    conds = []
                    if oy == -1:
                        conds.append(yy >= 1)
                    elif oy == 1:
                        conds.append(yy < H - 1)
                    if ox == -1:
                        conds.append(xx >= 1)
                    elif ox == 1:
                        conds.append(xx < W - 1)
                    if conds:
                        m = conds[0]
                        for extra in conds[1:]:
                            m = jnp.logical_and(m, extra)
                        t = jnp.where(m, t, 0.0)                 # zero padding border
                    taps.append(t.astype(jnp.bfloat16))
            patch = jnp.concatenate(taps, axis=0)                # (9*Cin, H*W) bf16

            acc = jnp.dot(w_ref[...], patch,
                          preferred_element_type=jnp.float32)    # (Cout, H*W) f32
            acc = acc + b_ref[...]                               # conv bias
            acc = jnp.maximum(acc, 0.0)                          # ReLU
            return acc * sc_ref[...] + sh_ref[...]               # BN (eval), fused

        def maxpool2x2(a, H, W):
            """MaxPool2d(2) on a flat (C, H*W) activation -> (C, (H/2)*(W/2))."""
            hw = H * W
            H2, W2 = H // 2, W // 2
            hw2 = H2 * W2
            hm = jnp.maximum(a, shift_cols(a, 1, hw))            # max over (x, x+1)
            vm = jnp.maximum(hm, shift_cols(hm, W, hw))          # max over (y, y+1)
            # Keep the (even y, even x) anchors with one MXU decimation matmul.
            q = lax.broadcasted_iota(jnp.int32, (hw, hw2), 0)
            r = lax.broadcasted_iota(jnp.int32, (hw, hw2), 1)
            if W2 == 1:
                src = 2 * W * r
            else:
                yo = r // W2
                src = 2 * W * yo + 2 * (r - yo * W2)
            dec = (q == src).astype(jnp.float32)
            return jnp.dot(vm, dec, preferred_element_type=jnp.float32)

        a = x_ref[0]                                             # (Cin0, H*W) f32
        for s in range(n_stage):
            a = conv_block(a, 2 * s)                             # conv_block1
            a = conv_block(a, 2 * s + 1)                         # conv_block2
            H, W, _, cout = plan[2 * s]
            out_refs[s][...] = a.reshape(1, cout, H * W)         # lane-dense store
            a = maxpool2x2(a, H, W)                              # fused MaxPool2d(2)
        out_refs[n_stage][...] = a.reshape((1,) + a.shape)

    return kernel


# ----------------------------------------------------------------------------
# _UnetEncoder.forward equivalent
# ----------------------------------------------------------------------------
def unet_encoder_forward(x_nchw, params):
    """Returns (pool5(f5), f1, f2, f3, f4, f5) - all NCHW, like the PyTorch module."""
    return _encoder_forward_jit(x_nchw, params, _roll_matches_jnp())


@partial(jax.jit, static_argnums=(2,))
def _encoder_forward_jit(x_nchw, params, roll_matches_jnp):
    N, in_ch, H, W = x_nchw.shape
    init_ch = params[0]["b"].shape[0]
    plan = _encoder_stage_plan(in_ch, init_ch, H, W)
    n_stage = len(plan) // 2

    x_flat = x_nchw.reshape(N, in_ch, H * W)        # free: NCHW is already spatial-last

    feat_geom = [(plan[2 * s][3], plan[2 * s][0], plan[2 * s][1]) for s in range(n_stage)]
    cf, hf, wf = feat_geom[-1]
    all_geom = feat_geom + [(cf, hf // 2, wf // 2)]

    out_shape = tuple(jax.ShapeDtypeStruct((N, c, h * w), jnp.float32)
                      for (c, h, w) in all_geom)
    out_specs = tuple(pl.BlockSpec((1, c, h * w), lambda n: (n, 0, 0))
                      for (c, h, w) in all_geom)

    in_specs = [pl.BlockSpec((1, in_ch, H * W), lambda n: (n, 0, 0))]
    flat_inputs = [x_flat]
    for blk in params:
        for name in ("w", "b", "scale", "shift"):
            arr = blk[name]
            in_specs.append(pl.BlockSpec(arr.shape, lambda n: (0, 0)))
            flat_inputs.append(arr)

    outs = pl.pallas_call(
        _make_encoder_kernel(plan, roll_matches_jnp),
        out_shape=out_shape,
        grid=(N,),
        in_specs=in_specs,
        out_specs=out_specs,
        compiler_params=pltpu.CompilerParams(
            dimension_semantics=("parallel",),
            vmem_limit_bytes=32 * 1024 * 1024),
    )(*flat_inputs)

    *feats, pooled = outs
    feats = [f.reshape(N, c, h, w) for f, (c, h, w) in zip(feats, feat_geom)]
    pooled = pooled.reshape(N, cf, hf // 2, wf // 2)
    return (pooled, *feats)


# ----------------------------------------------------------------------------
# Parameter construction (deterministic, synthetic) + packing + XLA f32 reference
# ----------------------------------------------------------------------------
def make_raw_encoder_params(key, in_channels, init_channels):
    """Synthetic parameters in PyTorch layout: Conv2d(3x3)+bias, BatchNorm2d (eval)."""
    c = init_channels
    stage_io = [(in_channels, c), (c, c), (c, 2 * c), (2 * c, 4 * c), (4 * c, 4 * c)]
    conv_io = []
    for cin, cout in stage_io:
        conv_io += [(cin, cout), (cout, cout)]
    keys = jax.random.split(key, len(conv_io))
    raw = []
    for k, (cin, cout) in zip(keys, conv_io):
        ks = jax.random.split(k, 6)
        raw.append(dict(
            w=0.1 * jax.random.normal(ks[0], (cout, cin, 3, 3), jnp.float32),
            b=0.1 * jax.random.normal(ks[1], (cout,), jnp.float32),
            gamma=1.0 + 0.1 * jax.random.normal(ks[2], (cout,), jnp.float32),
            beta=0.1 * jax.random.normal(ks[3], (cout,), jnp.float32),
            mean=0.1 * jax.random.normal(ks[4], (cout,), jnp.float32),
            var=jnp.abs(jax.random.normal(ks[5], (cout,), jnp.float32)) + 0.5,
        ))
    return raw


def pack_encoder_params(raw_params):
    """Pack PyTorch-layout params into the kernel's (Cout, 9*Cin) / (Cout, 1) layout."""
    packed = []
    for p in raw_params:
        cout, cin = p["w"].shape[0], p["w"].shape[1]
        # column index = (ky*3 + kx)*Cin + ci  -> matches the kernel's tap ordering
        w_packed = jnp.transpose(p["w"], (0, 2, 3, 1)).reshape(cout, 9 * cin)
        scale = p["gamma"] / jnp.sqrt(p["var"] + _BN_EPS)       # fused BN scale
        shift = p["beta"] - p["mean"] * scale                   # fused BN shift
        packed.append(dict(
            w=w_packed.astype(jnp.bfloat16),
            b=p["b"].reshape(cout, 1),
            scale=scale.reshape(cout, 1),
            shift=shift.reshape(cout, 1),
        ))
    return packed


def reference_encoder_forward(x_nchw, raw_params):
    """Pure-JAX (XLA) f32 reference of the PyTorch module, for numeric validation."""
    def conv_block(a, p):
        y = lax.conv_general_dilated(a, p["w"], (1, 1), "SAME",
                                     dimension_numbers=("NCHW", "OIHW", "NCHW"))
        y = y + p["b"][None, :, None, None]
        y = jnp.maximum(y, 0.0)
        inv = (p["gamma"] / jnp.sqrt(p["var"] + _BN_EPS))[None, :, None, None]
        return (y - p["mean"][None, :, None, None]) * inv + p["beta"][None, :, None, None]

    def pool(a):
        return lax.reduce_window(a, -jnp.inf, lax.max, (1, 1, 2, 2), (1, 1, 2, 2), "VALID")

    feats = []
    cur = x_nchw
    for s in range(5):
        cur = conv_block(cur, raw_params[2 * s])
        cur = conv_block(cur, raw_params[2 * s + 1])
        feats.append(cur)
        cur = pool(cur)
    return (cur, *feats)


# ----------------------------------------------------------------------------
if __name__ == "__main__":
    key = jax.random.PRNGKey(0)
    k_x, k_p = jax.random.split(key)

    N, IN_CH, H, W = 2, 3, 32, 32        # spatial must be divisible by 2**5
    INIT_CH = 4

    x = jax.random.normal(k_x, (N, IN_CH, H, W), jnp.float32)
    raw_params = make_raw_encoder_params(k_p, IN_CH, INIT_CH)
    params = pack_encoder_params(raw_params)

    outs = jax.block_until_ready(unet_encoder_forward(x, params))
    refs = jax.block_until_ready(reference_encoder_forward(x, raw_params))

    # Shape + numeric checks (mirror PyTorch _UnetEncoder outputs, NCHW).
    expected_shapes = [
        (N, 4 * INIT_CH, H // 32, W // 32),  # pool5(features[4]) -> bottleneck input
        (N, INIT_CH, H, W),                  # features[0]
        (N, INIT_CH, H // 2, W // 2),        # features[1]
        (N, 2 * INIT_CH, H // 4, W // 4),    # features[2]
        (N, 4 * INIT_CH, H // 8, W // 8),    # features[3]
        (N, 4 * INIT_CH, H // 16, W // 16),  # features[4]
    ]
    for o, r, e in zip(outs, refs, expected_shapes):
        assert o.shape == e, (o.shape, e)
        assert o.dtype == jnp.float32
        assert bool(jnp.all(jnp.isfinite(o)))
        err = float(jnp.max(jnp.abs(o - r)))
        ref_mag = float(jnp.max(jnp.abs(r)))
        # bf16 weights / im2col operands vs. the f32 XLA reference: allow bf16-level error.
        assert err <= 0.1 * ref_mag + 1e-3, (e, err, ref_mag)

    print("KERNEL_OK")
</pallas_src>

<mosaic_0001>
module attributes {stable_mosaic.version = 11 : i64} {
  func.func @probe(%arg0: memref<8x128xf32, #tpu.memory_space<vmem>>, %arg1: memref<8x128xf32, #tpu.memory_space<vmem>>) attributes {dimension_semantics = [], scalar_prefetch = 0 : i64, scratch_operands = 0 : i64, tpu.core_type = #tpu.core_type<tc>} {
    %c0 = arith.constant 0 : index
    %c0_0 = arith.constant 0 : index
    %0 = vector.load %arg0[%c0, %c0_0] : memref<8x128xf32, #tpu.memory_space<vmem>>, vector<8x128xf32>
    %c1_i32 = arith.constant 1 : i32
    %1 = tpu.dynamic_rotate %0 by %c1_i32 dim 1 : vector<8x128xf32>, i32 -> vector<8x128xf32>
    %c0_1 = arith.constant 0 : index
    %c0_2 = arith.constant 0 : index
    %2 = vector.load %arg1[%c0_1, %c0_2] : memref<8x128xf32, #tpu.memory_space<vmem>>, vector<8x128xf32>
    tpu.vector_store %arg1[%c0_1, %c0_2], %1 {strides = array<i32>} : memref<8x128xf32, #tpu.memory_space<vmem>>, vector<8x128xf32>,
    return
  }
}

</mosaic_0001>

<llo_original>
// kernel: tpu_custom_call.1
$region0: #{tpu_custom_call.1}
  #allocation0 [shape = 'u32[]', space=smem, size = 0x4, offset = 0x4, fixed_abs, tag = 'smem constant byte address 0x4 - core index']
  #allocation1 [shape = 'u32[144,128]{1,0:T(1,128)}', space=vmem, size = 0x12000, scoped, tag = 'internal scratch']
  %s0 = inlined_call_operand.hbm [shape: f32[8,128], index: 0, kind: input, shape index: {}]
  %s1 = inlined_call_operand.hbm [shape: f32[8,128], index: 1, kind: output, shape index: {}]
  %s2 = sld [smem:[#allocation0]]
  $region18: #{tpu_custom_call.1} parent=0
    _
  %s4 = ssub.s32 1, %s2
  %s5 = scalar_select 0, %s4, %s2
  $region1: #{tpu_custom_call.1} parent=0
    #allocation2 [shape = 'u8[4096]{0}', space=vmem, size = 0x1000, scoped, tag = 'input window, operand 0, single buffered']
    #allocation3 [shape = 's32[1]{0}', space=sflag, size = 0x4, scoped, tag = 'scoped memory for tpu_custom_call.1']
    #allocation4 [shape = 's32[1]{0}', space=sflag, size = 0x4, scoped, tag = 'scoped memory for tpu_custom_call.1']
    #allocation5 [shape = 'u8[4096]{0}', space=vmem, size = 0x1000, scoped, tag = 'output window, operand 0, single buffered']
    %6 = vsyncpa [#allocation3], 0
    %7 = vsyncpa [#allocation4], 0
    // Predicated region
    $region2: #{tpu_custom_call.1} parent=1 // pred_check
      _
    $region3: #{tpu_custom_call.1} parent=1 // pred_check_branch
      %9 = sbr.rel (0) target = $region5
    $region4: #{tpu_custom_call.1} parent=1 // pred_region
      %s11 = ssub.s32 128, 128
      %12 = vsyncadd [#allocation3], %s11
      %s14 = sshll.u32 [#allocation2], 4
      %s15 = int_to_ptr.vmem [resolvable:$true] %s14
      %17 = dma.hbm_to_vmem [thread:$0]  %s0, 128, %s15, [#allocation3]
    $region5: #{tpu_custom_call.1} parent=1 // pred_fallthru
      _
    // Predicated region
    $region6: #{tpu_custom_call.1} parent=1 // pred_check
      _
    $region7: #{tpu_custom_call.1} parent=1 // pred_check_branch
      %19 = sbr.rel (0) target = $region9
    $region8: #{tpu_custom_call.1} parent=1 // pred_region
      %20 = dma.done [#allocation3], 128
    $region9: #{tpu_custom_call.1} parent=1 // pred_fallthru
      _
    %v21 = vld [vmem:[#allocation2] sm:$0xff]
    %22 = vrot.lane.b32.xlu0 %v21, 1
    %v23 = vpop.permute.xlu0 %22
    %24 = vst [vmem:[#allocation5] sm:$0xff] %v23
    // Predicated region
    $region10: #{tpu_custom_call.1} parent=1 // pred_check
      _
    $region11: #{tpu_custom_call.1} parent=1 // pred_check_branch
      %26 = sbr.rel (0) target = $region13
    $region12: #{tpu_custom_call.1} parent=1 // pred_region
      %s28 = ssub.s32 128, 128
      %29 = vsyncadd [#allocation4], %s28
      %s31 = sshll.u32 [#allocation5], 4
      %s32 = int_to_ptr.vmem [resolvable:$true] %s31
      %34 = dma.vmem_to_hbm [thread:$0]  %s32, 128, %s1, [#allocation4]
    $region13: #{tpu_custom_call.1} parent=1 // pred_fallthru
      _
    // Predicated region
    $region14: #{tpu_custom_call.1} parent=1 // pred_check
      _
    $region15: #{tpu_custom_call.1} parent=1 // pred_check_branch
      %36 = sbr.rel (0) target = $region17
    $region16: #{tpu_custom_call.1} parent=1 // pred_region
      %37 = dma.done [#allocation4], 128
    $region17: #{tpu_custom_call.1} parent=1 // pred_fallthru
      _
    %38 = vsyncpa [#allocation3], 1
    %39 = vsyncpa [#allocation4], 1

</llo_original>
